<compile_context>
chip_gen: v7x
topology: tpu7x:2x2x1
jax: 0.10.0
libtpu: 0.0.40
codegen_flags: <defaults>
</compile_context>

<pallas_src>
import jax
import jax.numpy as jnp
from jax.experimental import pallas as pl
from jax.experimental.pallas import tpu as pltpu

TN = 128  # lane dimension


def _cdiv(a, b):
    return -(-a // b)


def _dice_bce_kernel(p_ref, a_ref, acc_ref):
    # Grid = (splits, steps).  Axis 0 is 'parallel' (sharded across TensorCores
    # on multi-TC chips), axis 1 is the 'arbitrary' reduction axis.  acc_ref is
    # the output block for this split; it stays resident in VMEM across axis 1.
    j = pl.program_id(1)

    @pl.when(j == 0)
    def _():
        acc_ref[...] = jnp.zeros_like(acc_ref)

    p = p_ref[...].astype(jnp.float32)
    a = a_ref[...].astype(jnp.float32)

    # BCE elementwise term; PyTorch's F.binary_cross_entropy clamps log at -100.
    # Keep the clamp BEFORE the multiply so zero-padded elements (p=0, a=0)
    # contribute exactly 0 (0 * -100, not 0 * -inf).  The two logs issue to the
    # EUP slot and overlap with the streaming DMA.
    logp = jnp.maximum(jnp.log(p), -100.0)
    log1mp = jnp.maximum(jnp.log(1.0 - p), -100.0)
    bce_el = -(a * logp + (1.0 - a) * log1mp)

    tm = p.shape[0]

    def fold(x):
        # Pure VPU vreg-wise adds: fold (tm, TN) down to an (8, TN) partial.
        # No per-step cross-lane (XLU) reduction and no scalar round-trips;
        # the one expensive full reduce happens once, in the wrapper.
        return jnp.sum(x.reshape(tm // 8, 8, TN), axis=0)

    acc_ref[0] += fold(p * a)      # intersection partial
    acc_ref[1] += fold(p + a)      # sum(p) + sum(a) partial (only the sum is used)
    acc_ref[2] += fold(bce_el)     # un-normalized BCE partial


def dice_bce(predicted, actual, smooth=0.01, block_rows=4096, splits=2):
    """Combined Dice + BCE loss (same semantics as the PyTorch DiceBCE module).

    block_rows: rows of 128 lanes per grid step.  (4096, 128) f32 tiles are
                2 MiB each; 2 inputs x 2 pipeline buffers = 8 MiB VMEM, which
                fits the default scoped VMEM limit on v5e/v6e/v7x while hiding
                the per-grid-step pipeline overhead (near-roofline streaming).
    splits:     leading 'parallel' grid axis; shards row-tiles across the two
                TensorCores on v7x.  On single-TC chips it just runs serially
                (correct, negligible overhead).
    """
    p = predicted.reshape(-1)          # keep native dtype; cast in-kernel
    a = actual.reshape(-1)
    n = p.shape[0]                     # static Python int at trace time

    rows = _cdiv(n, TN)
    tm = min(int(block_rows), _cdiv(rows, 8) * 8)
    tm = max(8, (tm // 8) * 8)         # block rows: multiple of 8 sublanes
    tiles = _cdiv(rows, tm)
    splits = max(1, min(int(splits), tiles))
    tiles = _cdiv(tiles, splits) * splits
    steps = tiles // splits
    total_rows = tiles * tm
    n_pad = total_rows * TN

    if n_pad > n:
        # Zero padding contributes 0 to every accumulated quantity (see kernel),
        # so no in-kernel masking is needed.  Only materialized when required.
        pad = n_pad - n
        p = jnp.concatenate([p, jnp.zeros((pad,), p.dtype)])
        a = jnp.concatenate([a, jnp.zeros((pad,), a.dtype)])

    p2 = p.reshape(total_rows, TN)
    a2 = a.reshape(total_rows, TN)

    in_map = lambda i, j: (i * steps + j, 0)

    partials = pl.pallas_call(
        _dice_bce_kernel,
        out_shape=jax.ShapeDtypeStruct((splits, 3, 8, TN), jnp.float32),
        grid=(splits, steps),
        in_specs=[
            pl.BlockSpec((tm, TN), in_map),
            pl.BlockSpec((tm, TN), in_map),
        ],
        out_specs=pl.BlockSpec((None, 3, 8, TN), lambda i, j: (i, 0, 0, 0)),
        compiler_params=pltpu.CompilerParams(
            dimension_semantics=("parallel", "arbitrary")),
    )(p2, a2)

    # Single final reduction (tiny: splits*3*8*128 elements) + scalar combine.
    sums = jnp.sum(partials, axis=(0, 2, 3))   # [intersection, sum_p+sum_a, bce_sum]
    inter = sums[0]
    psum_asum = sums[1]
    bce = sums[2] / jnp.float32(n)
    dice = 1.0 - (2.0 * inter + jnp.float32(smooth)) / (psum_asum + jnp.float32(smooth))
    return dice + bce


def _reference(predicted, actual, smooth=0.01):
    p = predicted.reshape(-1).astype(jnp.float32)
    a = actual.reshape(-1).astype(jnp.float32)
    inter = jnp.sum(p * a)
    bce = jnp.mean(-(a * jnp.maximum(jnp.log(p), -100.0)
                     + (1.0 - a) * jnp.maximum(jnp.log(1.0 - p), -100.0)))
    dice = 1.0 - (2.0 * inter + smooth) / (jnp.sum(p) + jnp.sum(a) + smooth)
    return dice + bce


if __name__ == "__main__":
    key = jax.random.PRNGKey(0)
    k1, k2 = jax.random.split(key)
    shape = (2, 4, 16, 16)  # NCHW
    predicted = jax.nn.sigmoid(jax.random.normal(k1, shape, dtype=jnp.float32))
    actual = jax.random.bernoulli(k2, 0.5, shape).astype(jnp.float32)

    loss = dice_bce(predicted, actual, smooth=0.01)
    loss = jax.block_until_ready(loss)

    ref = _reference(predicted, actual, smooth=0.01)
    assert jnp.allclose(loss, ref, atol=1e-4, rtol=1e-4), (loss, ref)
    print("KERNEL_OK")
</pallas_src>

<mosaic_0001>
module attributes {stable_mosaic.version = 11 : i64} {
  func.func @_dice_bce_kernel(%arg0: i32, %arg1: i32, %arg2: memref<16x128xf32, #tpu.memory_space<vmem>>, %arg3: memref<16x128xf32, #tpu.memory_space<vmem>>, %arg4: memref<1x3x8x128xf32, #tpu.memory_space<vmem>>) attributes {dimension_semantics = [#tpu.dimension_semantics<parallel>, #tpu.dimension_semantics<arbitrary>], iteration_bounds = array<i64: 1, 1>, scalar_prefetch = 0 : i64, scratch_operands = 0 : i64, tpu.core_type = #tpu.core_type<tc>, window_params = [{transform_indices = @transform_0, window_bounds = array<i64: 16, 128>}, {transform_indices = @transform_1, window_bounds = array<i64: 16, 128>}, {transform_indices = @transform_2, window_bounds = array<i64: 1, 3, 8, 128>}]} {
    %c0_i32 = arith.constant 0 : i32
    %0 = arith.cmpi eq, %arg1, %c0_i32 : i32
    %1 = arith.extui %0 : i1 to i32
    %c0_i32_0 = arith.constant 0 : i32
    %2 = arith.cmpi ne, %1, %c0_i32_0 : i32
    scf.if %2 {
      %cst_33 = arith.constant 0.000000e+00 : f32
      %46 = vector.broadcast %cst_33 : f32 to vector<3x8x128xf32>
      %c0_34 = arith.constant 0 : index
      %c0_35 = arith.constant 0 : index
      %c0_36 = arith.constant 0 : index
      %c0_37 = arith.constant 0 : index
      %47 = vector.load %arg4[%c0_34, %c0_35, %c0_36, %c0_37] : memref<1x3x8x128xf32, #tpu.memory_space<vmem>>, vector<1x3x8x128xf32>
      %48 = vector.shape_cast %47 : vector<1x3x8x128xf32> to vector<3x8x128xf32>
      %49 = vector.shape_cast %46 : vector<3x8x128xf32> to vector<1x3x8x128xf32>
      tpu.vector_store %arg4[%c0_34, %c0_35, %c0_36, %c0_37], %49 {strides = array<i32>} : memref<1x3x8x128xf32, #tpu.memory_space<vmem>>, vector<1x3x8x128xf32>,
    } else {
    }
    %c0 = arith.constant 0 : index
    %c0_1 = arith.constant 0 : index
    %3 = vector.load %arg2[%c0, %c0_1] : memref<16x128xf32, #tpu.memory_space<vmem>>, vector<16x128xf32>
    %c0_2 = arith.constant 0 : index
    %c0_3 = arith.constant 0 : index
    %4 = vector.load %arg3[%c0_2, %c0_3] : memref<16x128xf32, #tpu.memory_space<vmem>>, vector<16x128xf32>
    %5 = math.log %3 : vector<16x128xf32>
    %cst = arith.constant -1.000000e+02 : f32
    %6 = vector.broadcast %cst : f32 to vector<16x128xf32>
    %7 = arith.maximumf %5, %6 : vector<16x128xf32>
    %cst_4 = arith.constant 1.000000e+00 : f32
    %8 = vector.broadcast %cst_4 : f32 to vector<16x128xf32>
    %9 = arith.subf %8, %3 : vector<16x128xf32>
    %10 = math.log %9 : vector<16x128xf32>
    %cst_5 = arith.constant -1.000000e+02 : f32
    %11 = vector.broadcast %cst_5 : f32 to vector<16x128xf32>
    %12 = arith.maximumf %10, %11 : vector<16x128xf32>
    %13 = arith.mulf %4, %7 : vector<16x128xf32>
    %cst_6 = arith.constant 1.000000e+00 : f32
    %14 = vector.broadcast %cst_6 : f32 to vector<16x128xf32>
    %15 = arith.subf %14, %4 : vector<16x128xf32>
    %16 = arith.mulf %15, %12 : vector<16x128xf32>
    %17 = arith.addf %13, %16 : vector<16x128xf32>
    %cst_7 = arith.constant 0.000000e+00 : f32
    %18 = vector.broadcast %cst_7 : f32 to vector<16x128xf32>
    %19 = arith.subf %18, %17 : vector<16x128xf32>
    %c0_8 = arith.constant 0 : index
    %c0_9 = arith.constant 0 : index
    %c0_10 = arith.constant 0 : index
    %c0_11 = arith.constant 0 : index
    %20 = vector.load %arg4[%c0_8, %c0_9, %c0_10, %c0_11] : memref<1x3x8x128xf32, #tpu.memory_space<vmem>>, vector<1x1x8x128xf32>
    %21 = vector.shape_cast %20 : vector<1x1x8x128xf32> to vector<8x128xf32>
    %22 = arith.mulf %3, %4 : vector<16x128xf32>
    %23 = vector.shape_cast %22 : vector<16x128xf32> to vector<2x8x128xf32>
    %cst_12 = arith.constant dense<0.000000e+00> : vector<8x128xf32>
    %24 = vector.multi_reduction <add>, %23, %cst_12 [0] : vector<2x8x128xf32> to vector<8x128xf32>
    %25 = arith.addf %21, %24 : vector<8x128xf32>
    %c0_13 = arith.constant 0 : index
    %c0_14 = arith.constant 0 : index
    %c0_15 = arith.constant 0 : index
    %c0_16 = arith.constant 0 : index
    %26 = vector.load %arg4[%c0_13, %c0_14, %c0_15, %c0_16] : memref<1x3x8x128xf32, #tpu.memory_space<vmem>>, vector<1x1x8x128xf32>
    %27 = vector.shape_cast %26 : vector<1x1x8x128xf32> to vector<8x128xf32>
    %28 = vector.shape_cast %25 : vector<8x128xf32> to vector<1x1x8x128xf32>
    tpu.vector_store %arg4[%c0_13, %c0_14, %c0_15, %c0_16], %28 {strides = array<i32>} : memref<1x3x8x128xf32, #tpu.memory_space<vmem>>, vector<1x1x8x128xf32>,
    %c0_17 = arith.constant 0 : index
    %c1 = arith.constant 1 : index
    %c0_18 = arith.constant 0 : index
    %c0_19 = arith.constant 0 : index
    %29 = vector.load %arg4[%c0_17, %c1, %c0_18, %c0_19] : memref<1x3x8x128xf32, #tpu.memory_space<vmem>>, vector<1x1x8x128xf32>
    %30 = vector.shape_cast %29 : vector<1x1x8x128xf32> to vector<8x128xf32>
    %31 = arith.addf %3, %4 : vector<16x128xf32>
    %32 = vector.shape_cast %31 : vector<16x128xf32> to vector<2x8x128xf32>
    %cst_20 = arith.constant dense<0.000000e+00> : vector<8x128xf32>
    %33 = vector.multi_reduction <add>, %32, %cst_20 [0] : vector<2x8x128xf32> to vector<8x128xf32>
    %34 = arith.addf %30, %33 : vector<8x128xf32>
    %c0_21 = arith.constant 0 : index
    %c1_22 = arith.constant 1 : index
    %c0_23 = arith.constant 0 : index
    %c0_24 = arith.constant 0 : index
    %35 = vector.load %arg4[%c0_21, %c1_22, %c0_23, %c0_24] : memref<1x3x8x128xf32, #tpu.memory_space<vmem>>, vector<1x1x8x128xf32>
    %36 = vector.shape_cast %35 : vector<1x1x8x128xf32> to vector<8x128xf32>
    %37 = vector.shape_cast %34 : vector<8x128xf32> to vector<1x1x8x128xf32>
    tpu.vector_store %arg4[%c0_21, %c1_22, %c0_23, %c0_24], %37 {strides = array<i32>} : memref<1x3x8x128xf32, #tpu.memory_space<vmem>>, vector<1x1x8x128xf32>,
    %c0_25 = arith.constant 0 : index
    %c2 = arith.constant 2 : index
    %c0_26 = arith.constant 0 : index
    %c0_27 = arith.constant 0 : index
    %38 = vector.load %arg4[%c0_25, %c2, %c0_26, %c0_27] : memref<1x3x8x128xf32, #tpu.memory_space<vmem>>, vector<1x1x8x128xf32>
    %39 = vector.shape_cast %38 : vector<1x1x8x128xf32> to vector<8x128xf32>
    %40 = vector.shape_cast %19 : vector<16x128xf32> to vector<2x8x128xf32>
    %cst_28 = arith.constant dense<0.000000e+00> : vector<8x128xf32>
    %41 = vector.multi_reduction <add>, %40, %cst_28 [0] : vector<2x8x128xf32> to vector<8x128xf32>
    %42 = arith.addf %39, %41 : vector<8x128xf32>
    %c0_29 = arith.constant 0 : index
    %c2_30 = arith.constant 2 : index
    %c0_31 = arith.constant 0 : index
    %c0_32 = arith.constant 0 : index
    %43 = vector.load %arg4[%c0_29, %c2_30, %c0_31, %c0_32] : memref<1x3x8x128xf32, #tpu.memory_space<vmem>>, vector<1x1x8x128xf32>
    %44 = vector.shape_cast %43 : vector<1x1x8x128xf32> to vector<8x128xf32>
    %45 = vector.shape_cast %42 : vector<8x128xf32> to vector<1x1x8x128xf32>
    tpu.vector_store %arg4[%c0_29, %c2_30, %c0_31, %c0_32], %45 {strides = array<i32>} : memref<1x3x8x128xf32, #tpu.memory_space<vmem>>, vector<1x1x8x128xf32>,
    return
  }
  func.func @transform_0(%arg0: i32, %arg1: i32) -> (i32, i32) {
    %c1_i32 = arith.constant 1 : i32
    %0 = arith.muli %arg0, %c1_i32 : i32
    %1 = arith.addi %0, %arg1 : i32
    %c0_i32 = arith.constant 0 : i32
    %c0_i32_0 = arith.constant 0 : i32
    return %1, %c0_i32 : i32, i32
  }
  func.func @transform_1(%arg0: i32, %arg1: i32) -> (i32, i32) {
    %c1_i32 = arith.constant 1 : i32
    %0 = arith.muli %arg0, %c1_i32 : i32
    %1 = arith.addi %0, %arg1 : i32
    %c0_i32 = arith.constant 0 : i32
    %c0_i32_0 = arith.constant 0 : i32
    return %1, %c0_i32 : i32, i32
  }
  func.func @transform_2(%arg0: i32, %arg1: i32) -> (i32, i32, i32, i32) {
    %c0_i32 = arith.constant 0 : i32
    %c0_i32_0 = arith.constant 0 : i32
    %c0_i32_1 = arith.constant 0 : i32
    %c0_i32_2 = arith.constant 0 : i32
    return %arg0, %c0_i32, %c0_i32_0, %c0_i32_1 : i32, i32, i32, i32
  }
}

</mosaic_0001>

<llo_original>
// kernel: tpu_custom_call.1
$region0: #{tpu_custom_call.1}
  #allocation0 [shape = 'u32[]', space=smem, size = 0x4, offset = 0x4, fixed_abs, tag = 'smem constant byte address 0x4 - core index']
  #allocation1 [shape = 'u32[144,128]{1,0:T(1,128)}', space=vmem, size = 0x12000, scoped, tag = 'internal scratch']
  %s0 = inlined_call_operand.hbm [shape: f32[16,128], index: 0, kind: input, shape index: {}]
  %s1 = inlined_call_operand.hbm [shape: f32[16,128], index: 1, kind: input, shape index: {}]
  %s2 = inlined_call_operand.hbm [shape: f32[1,3,8,128], index: 2, kind: output, shape index: {}]
  %s3 = sld [smem:[#allocation0]]
  $region30: #{tpu_custom_call.1} parent=0
    _
  %s5 = ssub.s32 1, %s3
  %s6 = scalar_select 0, %s5, %s3
  $region1: #{tpu_custom_call.1} parent=0
    #allocation2 [shape = 'u8[8192]{0}', space=vmem, size = 0x2000, scoped, tag = 'input window, operand 0, single buffered']
    #allocation3 [shape = 's32[1]{0}', space=sflag, size = 0x4, scoped, tag = 'scoped memory for tpu_custom_call.1']
    #allocation4 [shape = 's32[1]{0}', space=sflag, size = 0x4, scoped, tag = 'scoped memory for tpu_custom_call.1']
    #allocation5 [shape = 'u8[8192]{0}', space=vmem, size = 0x2000, scoped, tag = 'input window, operand 1, single buffered']
    #allocation6 [shape = 's32[1]{0}', space=sflag, size = 0x4, scoped, tag = 'scoped memory for tpu_custom_call.1']
    #allocation7 [shape = 'u8[12288]{0}', space=vmem, size = 0x3000, scoped, tag = 'output window, operand 0, single buffered']
    %7 = vsyncpa [#allocation3], 0
    %8 = vsyncpa [#allocation6], 0
    %9 = vsyncpa [#allocation4], 0
    // Predicated region
    $region2: #{tpu_custom_call.1} parent=1 // pred_check
      _
    $region3: #{tpu_custom_call.1} parent=1 // pred_check_branch
      %11 = sbr.rel (0) target = $region5
    $region4: #{tpu_custom_call.1} parent=1 // pred_region
      %s12 = sadd.s32 0, 0
      %s13 = smul.u32 2, %s12
      %s15 = ssub.s32 256, 256
      %16 = vsyncadd [#allocation3], %s15
      %s17 = smul.addr %s13, 128
      %s18 = scalar_lea.hbm %s0, %s17
      %s19 = sshll.u32 [#allocation2], 4
      %s20 = int_to_ptr.vmem [resolvable:$true] %s19
      %25 = dma.hbm_to_vmem [thread:$0]  %s18, 256, %s20, [#allocation3], 128, 128, 8
    $region5: #{tpu_custom_call.1} parent=1 // pred_fallthru
      _
    // Predicated region
    $region6: #{tpu_custom_call.1} parent=1 // pred_check
      _
    $region7: #{tpu_custom_call.1} parent=1 // pred_check_branch
      %27 = sbr.rel (0) target = $region9
    $region8: #{tpu_custom_call.1} parent=1 // pred_region
      %s28 = sadd.s32 0, 0
      %s29 = smul.u32 2, %s28
      %s31 = ssub.s32 256, 256
      %32 = vsyncadd [#allocation6], %s31
      %s33 = smul.addr %s29, 128
      %s34 = scalar_lea.hbm %s1, %s33
      %s35 = sshll.u32 [#allocation5], 4
      %s36 = int_to_ptr.vmem [resolvable:$true] %s35
      %41 = dma.hbm_to_vmem [thread:$0]  %s34, 256, %s36, [#allocation6], 128, 128, 8
    $region9: #{tpu_custom_call.1} parent=1 // pred_fallthru
      _
    // Predicated region
    $region10: #{tpu_custom_call.1} parent=1 // pred_check
      _
    $region11: #{tpu_custom_call.1} parent=1 // pred_check_branch
      %43 = sbr.rel (0) target = $region13
    $region12: #{tpu_custom_call.1} parent=1 // pred_region
      %44 = dma.done [#allocation3], 256
    $region13: #{tpu_custom_call.1} parent=1 // pred_fallthru
      _
    // Predicated region
    $region14: #{tpu_custom_call.1} parent=1 // pred_check
      _
    $region15: #{tpu_custom_call.1} parent=1 // pred_check_branch
      %46 = sbr.rel (0) target = $region17
    $region16: #{tpu_custom_call.1} parent=1 // pred_region
      %47 = dma.done [#allocation6], 256
    $region17: #{tpu_custom_call.1} parent=1 // pred_fallthru
      _
    %s48 = sadd.s32 0, 0
    %s49 = smul.u32 2, %s48
    %s50 = sadd.s32 0, 0
    %s51 = smul.u32 2, %s50
    %p52 = scmp.eq.s32.totalorder 0, 0
    // Predicated region
    $region18: #{tpu_custom_call.1} parent=1 // pred_check
      %p53 = pneg %p52
    $region19: #{tpu_custom_call.1} parent=1 // pred_check_branch
      %55 = sbr.rel (%p53) target = $region21
    $region20: #{tpu_custom_call.1} parent=1 // pred_region
      %56 = vst [vmem:[#allocation7] sm:$0xff] 0.0
      %57 = vst [vmem:[#allocation7 + $0x8] sm:$0xff] 0.0
      %58 = vst [vmem:[#allocation7 + $0x10] sm:$0xff] 0.0
    $region21: #{tpu_custom_call.1} parent=1 // pred_fallthru
      _
    %v59 = vld [vmem:[#allocation2] sm:$0xff]
    %v60 = vld [vmem:[#allocation2 + $0x8] sm:$0xff]
    %v61 = vld [vmem:[#allocation5] sm:$0xff]
    %v62 = vld [vmem:[#allocation5 + $0x8] sm:$0xff]
    %v63 = vlog2.pop %v59
    %v64 = vmul.f32 %v63, 0.6931472
    %v65 = vlog2.pop %v60
    %v66 = vmul.f32 %v65, 0.6931472
    %v67 = vmax.f32 %v64, -100.0
    %v68 = vmax.f32 %v66, -100.0
    %v69 = vsub.f32 1.0, %v59
    %v70 = vsub.f32 1.0, %v60
    %v71 = vlog2.pop %v69
    %v72 = vmul.f32 %v71, 0.6931472
    %v73 = vlog2.pop %v70
    %v74 = vmul.f32 %v73, 0.6931472
    %v75 = vmax.f32 %v72, -100.0
    %v76 = vmax.f32 %v74, -100.0
    %v77 = vmul.f32 %v61, %v67
    %v78 = vmul.f32 %v62, %v68
    %v79 = vsub.f32 1.0, %v61
    %v80 = vsub.f32 1.0, %v62
    %v81 = vmul.f32 %v79, %v75
    %v82 = vmul.f32 %v80, %v76
    %v83 = vadd.f32 %v77, %v81
    %v84 = vadd.f32 %v78, %v82
    %v85 = vsub.f32 0.0, %v83
    %v86 = vsub.f32 0.0, %v84
    %v87 = vld [vmem:[#allocation7] sm:$0xff]
    %v88 = vmul.f32 %v59, %v61
    %v89 = vmul.f32 %v60, %v62
    %v90 = vadd.f32 %v88, %v89
    %v91 = vadd.f32 %v87, %v90
    %92 = vst [vmem:[#allocation7] sm:$0xff] %v91
    %s93 = scalar_lea.vmem [#allocation7], 8
    %v94 = vld [vmem:[%s93] sm:$0xff]
    %v95 = vadd.f32 %v59, %v61
    %v96 = vadd.f32 %v60, %v62
    %v97 = vadd.f32 %v95, %v96
    %v98 = vadd.f32 %v94, %v97
    %99 = vst [vmem:[%s93] sm:$0xff] %v98
    %s100 = scalar_lea.vmem [#allocation7], 16
    %v101 = vld [vmem:[%s100] sm:$0xff]
    %v102 = vadd.f32 %v85, %v86
    %v103 = vadd.f32 %v101, %v102
    %104 = vst [vmem:[%s100] sm:$0xff] %v103
    // Predicated region
    $region22: #{tpu_custom_call.1} parent=1 // pred_check
      _
    $region23: #{tpu_custom_call.1} parent=1 // pred_check_branch
      %106 = sbr.rel (0) target = $region25
    $region24: #{tpu_custom_call.1} parent=1 // pred_region
      %s108 = ssub.s32 384, 384
      %109 = vsyncadd [#allocation4], %s108
      %s110 = sshll.u32 [#allocation7], 4
      %s111 = int_to_ptr.vmem [resolvable:$true] %s110
      %116 = dma.vmem_to_hbm [thread:$0]  %s111, 384, %s2, [#allocation4], 128, 128, 8
    $region25: #{tpu_custom_call.1} parent=1 // pred_fallthru
      _
    // Predicated region
    $region26: #{tpu_custom_call.1} parent=1 // pred_check
      _
    $region27: #{tpu_custom_call.1} parent=1 // pred_check_branch
      %118 = sbr.rel (0) target = $region29
    $region28: #{tpu_custom_call.1} parent=1 // pred_region
      %119 = dma.done [#allocation4], 384
    $region29: #{tpu_custom_call.1} parent=1 // pred_fallthru
      _
    %120 = vsyncpa [#allocation3], 1
    %121 = vsyncpa [#allocation6], 1
    %122 = vsyncpa [#allocation4], 1

</llo_original>
